<compile_context>
chip_gen: v6e
topology: v6e:2x2x1
jax: 0.10.0
libtpu: 0.0.40
codegen_flags: <defaults>
</compile_context>

<pallas_src>
import math

import jax
import jax.numpy as jnp
from jax.experimental import pallas as pl
from jax.experimental.pallas import tpu as pltpu

EPS = 1e-5            # nn.LayerNorm default eps
ROW_TILE_CAP = 512    # 512-row tiles already sit on the HBM roofline plateau;
                      # >= 2 grid steps therefore only kick in for N > 512.


def _layernorm(h, gamma, beta):
    """PyTorch-equivalent LayerNorm (biased var, eps=1e-5), f32 math.

    One-pass form: mean and mean-of-squares are two independent lane
    reductions (shorter XLU dependency chain than reduce->sub->square->reduce).
    """
    mu = jnp.mean(h, axis=-1, keepdims=True)
    ms = jnp.mean(h * h, axis=-1, keepdims=True)
    var = jnp.maximum(ms - mu * mu, 0.0)       # clamp guards f32 cancellation
    return (h - mu) * jax.lax.rsqrt(var + EPS) * gamma + beta


def _build_kernel(tile_m, in_c, hidden, mxu_dtype, dense_in, dense_out):
    def kernel(x_ref, w1_ref, w2_ref, p_ref, o_ref):
        # p_ref rows: 0 = b1, 1 = b2, 2 = gamma, 3 = beta (shared LayerNorm).
        b1, b2 = p_ref[0:1, :], p_ref[1:2, :]
        gamma, beta = p_ref[2:3, :], p_ref[3:4, :]

        x = x_ref[...]
        if dense_in:
            # Lane-dense (tile_m*in_c/128, 128) slab -> (tile_m, in_c) rows.
            x = x.reshape(tile_m, in_c)

        # Layer 1: Linear -> LayerNorm -> ReLU (Dropout = identity in eval).
        h = jnp.dot(x.astype(mxu_dtype), w1_ref[...],
                    preferred_element_type=jnp.float32) + b1
        h = jnp.maximum(_layernorm(h, gamma, beta), 0.0)
        # TODO(synk): training-mode dropout would use pltpu.prng_seed +
        # pltpu.prng_random_bits; eval-mode dropout is the identity.

        # Layer 2: Linear -> LayerNorm (shared gamma/beta) -> ReLU.
        h = jnp.dot(h.astype(mxu_dtype), w2_ref[...],
                    preferred_element_type=jnp.float32) + b2
        h = jnp.maximum(_layernorm(h, gamma, beta), 0.0)
        # TODO(synk): if in_c/hidden stay at 16/32 forever, the elementwise /
        # LayerNorm stages could additionally be 4-rows-per-128-lane packed
        # (segmented pltpu.roll reductions); skipped — VALU is not saturated.

        if dense_out:
            # (tile_m, hidden) -> lane-dense (tile_m*hidden/128, 128): the
            # store becomes an unmasked vst and the writeback DMA contiguous.
            h = h.reshape(tile_m * hidden // 128, 128)
        o_ref[...] = h.astype(o_ref.dtype)

    return kernel


def _forward_impl(x, params, mxu_dtype, lane_dense):
    N, in_c = x.shape
    hidden = params["w1"].shape[1]
    sub = 16 if x.dtype == jnp.bfloat16 else 8        # min sublane granule

    dense_in = lane_dense and (in_c % 128 != 0)
    dense_out = lane_dense and (hidden % 128 != 0)

    # ---- row tiling: single step for small N, >= 2 only for large N -------
    n_tiles = max(1, pl.cdiv(N, ROW_TILE_CAP))
    rm = sub
    if dense_in:
        rm = math.lcm(rm, 128 // math.gcd(128, in_c))
    if dense_out:
        rm = math.lcm(rm, 128 // math.gcd(128, hidden))
    if n_tiles > 1:
        # Multi-tile blocks need a (sub,128)-aligned second-minor dimension.
        q = sub * 128
        if dense_in:
            rm = math.lcm(rm, q // math.gcd(q, in_c))
        if dense_out:
            rm = math.lcm(rm, q // math.gcd(q, hidden))
    tile_m = rm * pl.cdiv(N, n_tiles * rm)
    N_pad = n_tiles * tile_m

    x_in = x
    if N_pad != N:
        # Rare path: at most rm*n_tiles-1 zero rows (LayerNorm-safe). The
        # common case needs no pad, hence no extra HBM copy of x or out.
        x_in = jnp.pad(x_in, ((0, N_pad - N), (0, 0)))

    if dense_in:
        # Free row-major reshape: 128-lane-dense input slab -> contiguous
        # HBM->VMEM DMA, no 8x lane padding of the input double-buffer.
        x_in = x_in.reshape(N_pad * in_c // 128, 128)
        x_spec = pl.BlockSpec((tile_m * in_c // 128, 128), lambda i: (i, 0))
    else:
        x_spec = pl.BlockSpec((tile_m, in_c), lambda i: (i, 0))

    if dense_out:
        out_shape = jax.ShapeDtypeStruct((N_pad * hidden // 128, 128), x.dtype)
        out_spec = pl.BlockSpec((tile_m * hidden // 128, 128), lambda i: (i, 0))
    else:
        out_shape = jax.ShapeDtypeStruct((N_pad, hidden), x.dtype)
        out_spec = pl.BlockSpec((tile_m, hidden), lambda i: (i, 0))

    # Weights live whole in VMEM (tiny here); bf16 halves their bytes and
    # feeds the MXU at native rate. b1/b2 and the shared LayerNorm gamma/beta
    # are fused into one (4, hidden) block -> a single small parameter DMA.
    w1 = params["w1"].astype(mxu_dtype)
    w2 = params["w2"].astype(mxu_dtype)
    pvec = jnp.stack(
        [params["b1"], params["b2"], params["gamma"], params["beta"]], axis=0
    ).astype(jnp.float32)

    const = lambda shape: pl.BlockSpec(shape, lambda i: (0, 0))
    kernel = _build_kernel(tile_m, in_c, hidden, mxu_dtype, dense_in, dense_out)

    out = pl.pallas_call(
        kernel,
        out_shape=out_shape,
        grid_spec=pltpu.PrefetchScalarGridSpec(
            num_scalar_prefetch=0,
            grid=(n_tiles,),
            in_specs=[x_spec, const((in_c, hidden)), const((hidden, hidden)),
                      const((4, hidden))],
            out_specs=out_spec,
        ),
        compiler_params=pltpu.CompilerParams(
            # Rows are independent: shard grid steps across v7x's two
            # TensorCores; no codegen change (harmless) on v5e/v6e.
            dimension_semantics=("parallel",),
            # VMEM: ~1.5 MiB/step at these shapes -> default scoped limit is
            # fine on all generations.  If hidden ever scales into the
            # thousands (v7x only has 64 MiB physical VMEM): keep weights
            # bf16, single-buffer them (pipeline_mode=pl.Buffered(1)), set
            # vmem_limit_bytes explicitly, and add a K-reduction grid axis
            # over w2.
        ),
    )(x_in, w1, w2, pvec)

    if dense_out:
        out = out.reshape(N_pad, hidden)   # free, row-major
    if N_pad != N:
        out = out[:N]
    return out


def preprocessor_forward(x, params, *, mxu_dtype=jnp.bfloat16, lane_dense=True):
    """x: [N, in_channels] (f32 or bf16). Returns [N, hidden_channels] in x.dtype."""
    if lane_dense:
        try:
            return jax.block_until_ready(_forward_impl(x, params, mxu_dtype, True))
        except Exception:
            # Mosaic shape-cast support for the in-kernel sublane<->lane
            # relayout varies across toolchains; fall back to the
            # lane-padded (but still correct) layout.
            pass
    return jax.block_until_ready(_forward_impl(x, params, mxu_dtype, False))


def init_params(key, in_channels, hidden_channels):
    k1, k2, k3, k4 = jax.random.split(key, 4)
    # Deterministic synthetic init (stand-in for PyTorch kaiming-uniform).
    w1 = jax.random.normal(k1, (in_channels, hidden_channels), jnp.float32) * 0.1
    b1 = jax.random.normal(k2, (hidden_channels,), jnp.float32) * 0.01
    w2 = jax.random.normal(k3, (hidden_channels, hidden_channels), jnp.float32) * 0.1
    b2 = jax.random.normal(k4, (hidden_channels,), jnp.float32) * 0.01
    gamma = jnp.ones((hidden_channels,), jnp.float32)   # LayerNorm weight (shared)
    beta = jnp.zeros((hidden_channels,), jnp.float32)   # LayerNorm bias (shared)
    return dict(w1=w1, b1=b1, w2=w2, b2=b2, gamma=gamma, beta=beta)


def reference_forward(x, p, mxu_dtype=jnp.float32):
    """Pure-JAX reference mirroring the kernel's dtype policy (two-pass LN)."""
    w1 = p["w1"].astype(mxu_dtype)
    w2 = p["w2"].astype(mxu_dtype)

    def ln(h):
        mu = h.mean(-1, keepdims=True)
        var = ((h - mu) ** 2).mean(-1, keepdims=True)
        return (h - mu) / jnp.sqrt(var + EPS) * p["gamma"] + p["beta"]

    h = jnp.dot(x.astype(mxu_dtype), w1,
                preferred_element_type=jnp.float32) + p["b1"]
    h = jnp.maximum(ln(h), 0.0)
    h = jnp.dot(h.astype(mxu_dtype), w2,
                preferred_element_type=jnp.float32) + p["b2"]
    return jnp.maximum(ln(h), 0.0)


if __name__ == "__main__":
    in_channels, hidden_channels = 16, 32
    N = 128  # e.g. number of nodes / rows

    key = jax.random.PRNGKey(0)
    kx, kp = jax.random.split(key)
    x = jax.random.normal(kx, (N, in_channels), jnp.float32)
    params = init_params(kp, in_channels, hidden_channels)

    # Main path (bf16 MXU feed, f32 accumulation + LayerNorm).
    out = jax.block_until_ready(preprocessor_forward(x, params))
    ref = reference_forward(x, params, mxu_dtype=jnp.bfloat16)
    assert out.shape == (N, hidden_channels)
    assert jnp.allclose(out, ref, atol=2e-3, rtol=2e-3), "mismatch vs reference"

    # Semantic fidelity to the original f32 module: bf16 MXU feed only adds
    # ~1% relative noise, checked in L2 rather than elementwise.
    ref_f32 = reference_forward(x, params, mxu_dtype=jnp.float32)
    rel_l2 = jnp.linalg.norm(out - ref_f32) / jnp.linalg.norm(ref_f32)
    assert float(rel_l2) < 0.05, "kernel deviates from f32 module semantics"

    # Ragged row count: exercises the divisor-based tile choice (72 rows ->
    # one 72-row tile, no padding, no extra HBM copies).
    x_r = x[:72]
    out_r = jax.block_until_ready(preprocessor_forward(x_r, params))
    ref_r = reference_forward(x_r, params, mxu_dtype=jnp.bfloat16)
    assert out_r.shape == (72, hidden_channels)
    assert jnp.allclose(out_r, ref_r, atol=2e-3, rtol=2e-3), "ragged mismatch"

    print("KERNEL_OK")
</pallas_src>

<mosaic_0001>
module attributes {stable_mosaic.version = 11 : i64} {
  func.func @kernel(%arg0: i32, %arg1: memref<16x128xf32, #tpu.memory_space<vmem>>, %arg2: memref<16x32xbf16, #tpu.memory_space<vmem>>, %arg3: memref<32x32xbf16, #tpu.memory_space<vmem>>, %arg4: memref<4x32xf32, #tpu.memory_space<vmem>>, %arg5: memref<32x128xf32, #tpu.memory_space<vmem>>) attributes {dimension_semantics = [#tpu.dimension_semantics<parallel>], iteration_bounds = array<i64: 1>, scalar_prefetch = 0 : i64, scratch_operands = 0 : i64, tpu.core_type = #tpu.core_type<tc>, window_params = [{transform_indices = @transform_0, window_bounds = array<i64: 16, 128>}, {pipeline_mode = #tpu.pipeline_mode<synchronous>, transform_indices = @transform_1, window_bounds = array<i64: 16, 32>}, {pipeline_mode = #tpu.pipeline_mode<synchronous>, transform_indices = @transform_2, window_bounds = array<i64: 32, 32>}, {pipeline_mode = #tpu.pipeline_mode<synchronous>, transform_indices = @transform_3, window_bounds = array<i64: 4, 32>}, {transform_indices = @transform_4, window_bounds = array<i64: 32, 128>}]} {
    %c0 = arith.constant 0 : index
    %c0_0 = arith.constant 0 : index
    %0 = vector.load %arg4[%c0, %c0_0] : memref<4x32xf32, #tpu.memory_space<vmem>>, vector<1x32xf32>
    %c1 = arith.constant 1 : index
    %c0_1 = arith.constant 0 : index
    %1 = vector.load %arg4[%c1, %c0_1] : memref<4x32xf32, #tpu.memory_space<vmem>>, vector<1x32xf32>
    %c2 = arith.constant 2 : index
    %c0_2 = arith.constant 0 : index
    %2 = vector.load %arg4[%c2, %c0_2] : memref<4x32xf32, #tpu.memory_space<vmem>>, vector<1x32xf32>
    %c3 = arith.constant 3 : index
    %c0_3 = arith.constant 0 : index
    %3 = vector.load %arg4[%c3, %c0_3] : memref<4x32xf32, #tpu.memory_space<vmem>>, vector<1x32xf32>
    %c0_4 = arith.constant 0 : index
    %c0_5 = arith.constant 0 : index
    %4 = vector.load %arg1[%c0_4, %c0_5] : memref<16x128xf32, #tpu.memory_space<vmem>>, vector<16x128xf32>
    %5 = vector.shape_cast %4 : vector<16x128xf32> to vector<128x16xf32>
    %6 = arith.truncf %5 : vector<128x16xf32> to vector<128x16xbf16>
    %c0_6 = arith.constant 0 : index
    %c0_7 = arith.constant 0 : index
    %7 = vector.load %arg2[%c0_6, %c0_7] : memref<16x32xbf16, #tpu.memory_space<vmem>>, vector<16x32xbf16>
    %cst = arith.constant dense<0.000000e+00> : vector<128x32xf32>
    %8 = tpu.matmul %6, %7, %cst {dimension_numbers = #tpu.dot_dimension_numbers<[1], [0], [0], [1], [0, 0, 1, 1], [], []>} : vector<128x16xbf16>, vector<16x32xbf16>, vector<128x32xf32> -> vector<128x32xf32>
    %9 = vector.broadcast %0 : vector<1x32xf32> to vector<128x32xf32>
    %10 = arith.addf %8, %9 : vector<128x32xf32>
    %cst_8 = arith.constant dense<0.000000e+00> : vector<128xf32>
    %11 = vector.multi_reduction <add>, %10, %cst_8 [1] : vector<128x32xf32> to vector<128xf32>
    %12 = vector.shape_cast %11 : vector<128xf32> to vector<128x1xf32>
    %cst_9 = arith.constant 3.200000e+01 : f32
    %13 = vector.broadcast %cst_9 : f32 to vector<128x1xf32>
    %14 = arith.divf %12, %13 : vector<128x1xf32>
    %15 = arith.mulf %10, %10 : vector<128x32xf32>
    %cst_10 = arith.constant dense<0.000000e+00> : vector<128xf32>
    %16 = vector.multi_reduction <add>, %15, %cst_10 [1] : vector<128x32xf32> to vector<128xf32>
    %17 = vector.shape_cast %16 : vector<128xf32> to vector<128x1xf32>
    %cst_11 = arith.constant 3.200000e+01 : f32
    %18 = vector.broadcast %cst_11 : f32 to vector<128x1xf32>
    %19 = arith.divf %17, %18 : vector<128x1xf32>
    %20 = arith.mulf %14, %14 : vector<128x1xf32>
    %21 = arith.subf %19, %20 : vector<128x1xf32>
    %cst_12 = arith.constant 0.000000e+00 : f32
    %22 = vector.broadcast %cst_12 : f32 to vector<128x1xf32>
    %23 = arith.maximumf %21, %22 : vector<128x1xf32>
    %24 = vector.broadcast %14 : vector<128x1xf32> to vector<128x32xf32>
    %25 = arith.subf %10, %24 : vector<128x32xf32>
    %cst_13 = arith.constant 9.99999974E-6 : f32
    %26 = vector.broadcast %cst_13 : f32 to vector<128x1xf32>
    %27 = arith.addf %23, %26 : vector<128x1xf32>
    %28 = math.rsqrt %27 : vector<128x1xf32>
    %29 = vector.broadcast %28 : vector<128x1xf32> to vector<128x32xf32>
    %30 = arith.mulf %25, %29 : vector<128x32xf32>
    %31 = vector.broadcast %2 : vector<1x32xf32> to vector<128x32xf32>
    %32 = arith.mulf %30, %31 : vector<128x32xf32>
    %33 = vector.broadcast %3 : vector<1x32xf32> to vector<128x32xf32>
    %34 = arith.addf %32, %33 : vector<128x32xf32>
    %cst_14 = arith.constant 0.000000e+00 : f32
    %35 = vector.broadcast %cst_14 : f32 to vector<128x32xf32>
    %36 = arith.maximumf %34, %35 : vector<128x32xf32>
    %37 = arith.truncf %36 : vector<128x32xf32> to vector<128x32xbf16>
    %c0_15 = arith.constant 0 : index
    %c0_16 = arith.constant 0 : index
    %38 = vector.load %arg3[%c0_15, %c0_16] : memref<32x32xbf16, #tpu.memory_space<vmem>>, vector<32x32xbf16>
    %cst_17 = arith.constant dense<0.000000e+00> : vector<128x32xf32>
    %39 = tpu.matmul %37, %38, %cst_17 {dimension_numbers = #tpu.dot_dimension_numbers<[1], [0], [0], [1], [0, 0, 1, 1], [], []>} : vector<128x32xbf16>, vector<32x32xbf16>, vector<128x32xf32> -> vector<128x32xf32>
    %40 = vector.broadcast %1 : vector<1x32xf32> to vector<128x32xf32>
    %41 = arith.addf %39, %40 : vector<128x32xf32>
    %cst_18 = arith.constant dense<0.000000e+00> : vector<128xf32>
    %42 = vector.multi_reduction <add>, %41, %cst_18 [1] : vector<128x32xf32> to vector<128xf32>
    %43 = vector.shape_cast %42 : vector<128xf32> to vector<128x1xf32>
    %cst_19 = arith.constant 3.200000e+01 : f32
    %44 = vector.broadcast %cst_19 : f32 to vector<128x1xf32>
    %45 = arith.divf %43, %44 : vector<128x1xf32>
    %46 = arith.mulf %41, %41 : vector<128x32xf32>
    %cst_20 = arith.constant dense<0.000000e+00> : vector<128xf32>
    %47 = vector.multi_reduction <add>, %46, %cst_20 [1] : vector<128x32xf32> to vector<128xf32>
    %48 = vector.shape_cast %47 : vector<128xf32> to vector<128x1xf32>
    %cst_21 = arith.constant 3.200000e+01 : f32
    %49 = vector.broadcast %cst_21 : f32 to vector<128x1xf32>
    %50 = arith.divf %48, %49 : vector<128x1xf32>
    %51 = arith.mulf %45, %45 : vector<128x1xf32>
    %52 = arith.subf %50, %51 : vector<128x1xf32>
    %cst_22 = arith.constant 0.000000e+00 : f32
    %53 = vector.broadcast %cst_22 : f32 to vector<128x1xf32>
    %54 = arith.maximumf %52, %53 : vector<128x1xf32>
    %55 = vector.broadcast %45 : vector<128x1xf32> to vector<128x32xf32>
    %56 = arith.subf %41, %55 : vector<128x32xf32>
    %cst_23 = arith.constant 9.99999974E-6 : f32
    %57 = vector.broadcast %cst_23 : f32 to vector<128x1xf32>
    %58 = arith.addf %54, %57 : vector<128x1xf32>
    %59 = math.rsqrt %58 : vector<128x1xf32>
    %60 = vector.broadcast %59 : vector<128x1xf32> to vector<128x32xf32>
    %61 = arith.mulf %56, %60 : vector<128x32xf32>
    %62 = vector.broadcast %2 : vector<1x32xf32> to vector<128x32xf32>
    %63 = arith.mulf %61, %62 : vector<128x32xf32>
    %64 = vector.broadcast %3 : vector<1x32xf32> to vector<128x32xf32>
    %65 = arith.addf %63, %64 : vector<128x32xf32>
    %cst_24 = arith.constant 0.000000e+00 : f32
    %66 = vector.broadcast %cst_24 : f32 to vector<128x32xf32>
    %67 = arith.maximumf %65, %66 : vector<128x32xf32>
    %68 = vector.shape_cast %67 : vector<128x32xf32> to vector<32x128xf32>
    %c0_25 = arith.constant 0 : index
    %c0_26 = arith.constant 0 : index
    %69 = vector.load %arg5[%c0_25, %c0_26] : memref<32x128xf32, #tpu.memory_space<vmem>>, vector<32x128xf32>
    tpu.vector_store %arg5[%c0_25, %c0_26], %68 {strides = array<i32>} : memref<32x128xf32, #tpu.memory_space<vmem>>, vector<32x128xf32>,
    return
  }
  func.func @transform_0(%arg0: i32) -> (i32, i32) {
    %c0_i32 = arith.constant 0 : i32
    %c0_i32_0 = arith.constant 0 : i32
    return %arg0, %c0_i32 : i32, i32
  }
  func.func @transform_1(%arg0: i32) -> (i32, i32) {
    %c0_i32 = arith.constant 0 : i32
    %c0_i32_0 = arith.constant 0 : i32
    %c0_i32_1 = arith.constant 0 : i32
    return %c0_i32, %c0_i32_0 : i32, i32
  }
  func.func @transform_2(%arg0: i32) -> (i32, i32) {
    %c0_i32 = arith.constant 0 : i32
    %c0_i32_0 = arith.constant 0 : i32
    %c0_i32_1 = arith.constant 0 : i32
    return %c0_i32, %c0_i32_0 : i32, i32
  }
  func.func @transform_3(%arg0: i32) -> (i32, i32) {
    %c0_i32 = arith.constant 0 : i32
    %c0_i32_0 = arith.constant 0 : i32
    %c0_i32_1 = arith.constant 0 : i32
    return %c0_i32, %c0_i32_0 : i32, i32
  }
  func.func @transform_4(%arg0: i32) -> (i32, i32) {
    %c0_i32 = arith.constant 0 : i32
    %c0_i32_0 = arith.constant 0 : i32
    return %arg0, %c0_i32 : i32, i32
  }
}

module attributes {stable_mosaic.version = 11 : i64} {
  func.func @kernel(%arg0: i32, %arg1: memref<128x16xf32, #tpu.memory_space<vmem>>, %arg2: memref<16x32xbf16, #tpu.memory_space<vmem>>, %arg3: memref<32x32xbf16, #tpu.memory_space<vmem>>, %arg4: memref<4x32xf32, #tpu.memory_space<vmem>>, %arg5: memref<128x32xf32, #tpu.memory_space<vmem>>) attributes {dimension_semantics = [#tpu.dimension_semantics<parallel>], iteration_bounds = array<i64: 1>, scalar_prefetch = 0 : i64, scratch_operands = 0 : i64, tpu.core_type = #tpu.core_type<tc>, window_params = [{transform_indices = @transform_0, window_bounds = array<i64: 128, 16>}, {pipeline_mode = #tpu.pipeline_mode<synchronous>, transform_indices = @transform_1, window_bounds = array<i64: 16, 32>}, {pipeline_mode = #tpu.pipeline_mode<synchronous>, transform_indices = @transform_2, window_bounds = array<i64: 32, 32>}, {pipeline_mode = #tpu.pipeline_mode<synchronous>, transform_indices = @transform_3, window_bounds = array<i64: 4, 32>}, {transform_indices = @transform_4, window_bounds = array<i64: 128, 32>}]} {
    %c0 = arith.constant 0 : index
    %c0_0 = arith.constant 0 : index
    %0 = vector.load %arg4[%c0, %c0_0] : memref<4x32xf32, #tpu.memory_space<vmem>>, vector<1x32xf32>
    %c1 = arith.constant 1 : index
    %c0_1 = arith.constant 0 : index
    %1 = vector.load %arg4[%c1, %c0_1] : memref<4x32xf32, #tpu.memory_space<vmem>>, vector<1x32xf32>
    %c2 = arith.constant 2 : index
    %c0_2 = arith.constant 0 : index
    %2 = vector.load %arg4[%c2, %c0_2] : memref<4x32xf32, #tpu.memory_space<vmem>>, vector<1x32xf32>
    %c3 = arith.constant 3 : index
    %c0_3 = arith.constant 0 : index
    %3 = vector.load %arg4[%c3, %c0_3] : memref<4x32xf32, #tpu.memory_space<vmem>>, vector<1x32xf32>
    %c0_4 = arith.constant 0 : index
    %c0_5 = arith.constant 0 : index
    %4 = vector.load %arg1[%c0_4, %c0_5] : memref<128x16xf32, #tpu.memory_space<vmem>>, vector<128x16xf32>
    %5 = arith.truncf %4 : vector<128x16xf32> to vector<128x16xbf16>
    %c0_6 = arith.constant 0 : index
    %c0_7 = arith.constant 0 : index
    %6 = vector.load %arg2[%c0_6, %c0_7] : memref<16x32xbf16, #tpu.memory_space<vmem>>, vector<16x32xbf16>
    %cst = arith.constant dense<0.000000e+00> : vector<128x32xf32>
    %7 = tpu.matmul %5, %6, %cst {dimension_numbers = #tpu.dot_dimension_numbers<[1], [0], [0], [1], [0, 0, 1, 1], [], []>} : vector<128x16xbf16>, vector<16x32xbf16>, vector<128x32xf32> -> vector<128x32xf32>
    %8 = vector.broadcast %0 : vector<1x32xf32> to vector<128x32xf32>
    %9 = arith.addf %7, %8 : vector<128x32xf32>
    %cst_8 = arith.constant dense<0.000000e+00> : vector<128xf32>
    %10 = vector.multi_reduction <add>, %9, %cst_8 [1] : vector<128x32xf32> to vector<128xf32>
    %11 = vector.shape_cast %10 : vector<128xf32> to vector<128x1xf32>
    %cst_9 = arith.constant 3.200000e+01 : f32
    %12 = vector.broadcast %cst_9 : f32 to vector<128x1xf32>
    %13 = arith.divf %11, %12 : vector<128x1xf32>
    %14 = arith.mulf %9, %9 : vector<128x32xf32>
    %cst_10 = arith.constant dense<0.000000e+00> : vector<128xf32>
    %15 = vector.multi_reduction <add>, %14, %cst_10 [1] : vector<128x32xf32> to vector<128xf32>
    %16 = vector.shape_cast %15 : vector<128xf32> to vector<128x1xf32>
    %cst_11 = arith.constant 3.200000e+01 : f32
    %17 = vector.broadcast %cst_11 : f32 to vector<128x1xf32>
    %18 = arith.divf %16, %17 : vector<128x1xf32>
    %19 = arith.mulf %13, %13 : vector<128x1xf32>
    %20 = arith.subf %18, %19 : vector<128x1xf32>
    %cst_12 = arith.constant 0.000000e+00 : f32
    %21 = vector.broadcast %cst_12 : f32 to vector<128x1xf32>
    %22 = arith.maximumf %20, %21 : vector<128x1xf32>
    %23 = vector.broadcast %13 : vector<128x1xf32> to vector<128x32xf32>
    %24 = arith.subf %9, %23 : vector<128x32xf32>
    %cst_13 = arith.constant 9.99999974E-6 : f32
    %25 = vector.broadcast %cst_13 : f32 to vector<128x1xf32>
    %26 = arith.addf %22, %25 : vector<128x1xf32>
    %27 = math.rsqrt %26 : vector<128x1xf32>
    %28 = vector.broadcast %27 : vector<128x1xf32> to vector<128x32xf32>
    %29 = arith.mulf %24, %28 : vector<128x32xf32>
    %30 = vector.broadcast %2 : vector<1x32xf32> to vector<128x32xf32>
    %31 = arith.mulf %29, %30 : vector<128x32xf32>
    %32 = vector.broadcast %3 : vector<1x32xf32> to vector<128x32xf32>
    %33 = arith.addf %31, %32 : vector<128x32xf32>
    %cst_14 = arith.constant 0.000000e+00 : f32
    %34 = vector.broadcast %cst_14 : f32 to vector<128x32xf32>
    %35 = arith.maximumf %33, %34 : vector<128x32xf32>
    %36 = arith.truncf %35 : vector<128x32xf32> to vector<128x32xbf16>
    %c0_15 = arith.constant 0 : index
    %c0_16 = arith.constant 0 : index
    %37 = vector.load %arg3[%c0_15, %c0_16] : memref<32x32xbf16, #tpu.memory_space<vmem>>, vector<32x32xbf16>
    %cst_17 = arith.constant dense<0.000000e+00> : vector<128x32xf32>
    %38 = tpu.matmul %36, %37, %cst_17 {dimension_numbers = #tpu.dot_dimension_numbers<[1], [0], [0], [1], [0, 0, 1, 1], [], []>} : vector<128x32xbf16>, vector<32x32xbf16>, vector<128x32xf32> -> vector<128x32xf32>
    %39 = vector.broadcast %1 : vector<1x32xf32> to vector<128x32xf32>
    %40 = arith.addf %38, %39 : vector<128x32xf32>
    %cst_18 = arith.constant dense<0.000000e+00> : vector<128xf32>
    %41 = vector.multi_reduction <add>, %40, %cst_18 [1] : vector<128x32xf32> to vector<128xf32>
    %42 = vector.shape_cast %41 : vector<128xf32> to vector<128x1xf32>
    %cst_19 = arith.constant 3.200000e+01 : f32
    %43 = vector.broadcast %cst_19 : f32 to vector<128x1xf32>
    %44 = arith.divf %42, %43 : vector<128x1xf32>
    %45 = arith.mulf %40, %40 : vector<128x32xf32>
    %cst_20 = arith.constant dense<0.000000e+00> : vector<128xf32>
    %46 = vector.multi_reduction <add>, %45, %cst_20 [1] : vector<128x32xf32> to vector<128xf32>
    %47 = vector.shape_cast %46 : vector<128xf32> to vector<128x1xf32>
    %cst_21 = arith.constant 3.200000e+01 : f32
    %48 = vector.broadcast %cst_21 : f32 to vector<128x1xf32>
    %49 = arith.divf %47, %48 : vector<128x1xf32>
    %50 = arith.mulf %44, %44 : vector<128x1xf32>
    %51 = arith.subf %49, %50 : vector<128x1xf32>
    %cst_22 = arith.constant 0.000000e+00 : f32
    %52 = vector.broadcast %cst_22 : f32 to vector<128x1xf32>
    %53 = arith.maximumf %51, %52 : vector<128x1xf32>
    %54 = vector.broadcast %44 : vector<128x1xf32> to vector<128x32xf32>
    %55 = arith.subf %40, %54 : vector<128x32xf32>
    %cst_23 = arith.constant 9.99999974E-6 : f32
    %56 = vector.broadcast %cst_23 : f32 to vector<128x1xf32>
    %57 = arith.addf %53, %56 : vector<128x1xf32>
    %58 = math.rsqrt %57 : vector<128x1xf32>
    %59 = vector.broadcast %58 : vector<128x1xf32> to vector<128x32xf32>
    %60 = arith.mulf %55, %59 : vector<128x32xf32>
    %61 = vector.broadcast %2 : vector<1x32xf32> to vector<128x32xf32>
    %62 = arith.mulf %60, %61 : vector<128x32xf32>
    %63 = vector.broadcast %3 : vector<1x32xf32> to vector<128x32xf32>
    %64 = arith.addf %62, %63 : vector<128x32xf32>
    %cst_24 = arith.constant 0.000000e+00 : f32
    %65 = vector.broadcast %cst_24 : f32 to vector<128x32xf32>
    %66 = arith.maximumf %64, %65 : vector<128x32xf32>
    %c0_25 = arith.constant 0 : index
    %c0_26 = arith.constant 0 : index
    %67 = vector.load %arg5[%c0_25, %c0_26] : memref<128x32xf32, #tpu.memory_space<vmem>>, vector<128x32xf32>
    tpu.vector_store %arg5[%c0_25, %c0_26], %66 {strides = array<i32>} : memref<128x32xf32, #tpu.memory_space<vmem>>, vector<128x32xf32>,
    return
  }
  func.func @transform_0(%arg0: i32) -> (i32, i32) {
    %c0_i32 = arith.constant 0 : i32
    %c0_i32_0 = arith.constant 0 : i32
    return %arg0, %c0_i32 : i32, i32
  }
  func.func @transform_1(%arg0: i32) -> (i32, i32) {
    %c0_i32 = arith.constant 0 : i32
    %c0_i32_0 = arith.constant 0 : i32
    %c0_i32_1 = arith.constant 0 : i32
    return %c0_i32, %c0_i32_0 : i32, i32
  }
  func.func @transform_2(%arg0: i32) -> (i32, i32) {
    %c0_i32 = arith.constant 0 : i32
    %c0_i32_0 = arith.constant 0 : i32
    %c0_i32_1 = arith.constant 0 : i32
    return %c0_i32, %c0_i32_0 : i32, i32
  }
  func.func @transform_3(%arg0: i32) -> (i32, i32) {
    %c0_i32 = arith.constant 0 : i32
    %c0_i32_0 = arith.constant 0 : i32
    %c0_i32_1 = arith.constant 0 : i32
    return %c0_i32, %c0_i32_0 : i32, i32
  }
  func.func @transform_4(%arg0: i32) -> (i32, i32) {
    %c0_i32 = arith.constant 0 : i32
    %c0_i32_0 = arith.constant 0 : i32
    return %arg0, %c0_i32 : i32, i32
  }
}

</mosaic_0001>

<llo_original>
// kernel: tpu_custom_call.1
$region0: #{tpu_custom_call.1}
  #allocation0 [shape = 'u32[]', space=smem, size = 0x4, offset = 0x4, fixed_abs, tag = 'smem constant byte address 0x4 - core index']
  #allocation1 [shape = 'u32[144,128]{1,0:T(1,128)}', space=vmem, size = 0x12000, scoped, tag = 'internal scratch']
  %s0 = inlined_call_operand.vmem [shape: f32[128,16], index: 0, kind: input, shape index: {}]
  %s1 = inlined_call_operand.vmem [shape: bf16[16,32], index: 1, kind: input, shape index: {}]
  %s2 = inlined_call_operand.vmem [shape: bf16[32,32], index: 2, kind: input, shape index: {}]
  %s3 = inlined_call_operand.vmem [shape: f32[4,32], index: 3, kind: input, shape index: {}]
  %s4 = inlined_call_operand.vmem [shape: f32[128,32], index: 4, kind: output, shape index: {}]
  %s5 = sld [smem:[#allocation0]]
  $region26: #{tpu_custom_call.1} parent=0
    _
  %s7 = ssub.s32 1, %s5
  %s8 = scalar_select 0, %s7, %s5
  // Predicated region
  $region2: #{tpu_custom_call.1} parent=0 // pred_check
    _
  $region3: #{tpu_custom_call.1} parent=0 // pred_check_branch
    %10 = sbr.rel (0) target = $region5
  $region4: #{tpu_custom_call.1} parent=0 // pred_region
    _
  $region5: #{tpu_custom_call.1} parent=0 // pred_fallthru
    _
  // Predicated region
  $region6: #{tpu_custom_call.1} parent=0 // pred_check
    _
  $region7: #{tpu_custom_call.1} parent=0 // pred_check_branch
    %12 = sbr.rel (0) target = $region9
  $region8: #{tpu_custom_call.1} parent=0 // pred_region
    _
  $region9: #{tpu_custom_call.1} parent=0 // pred_fallthru
    _
  // Predicated region
  $region10: #{tpu_custom_call.1} parent=0 // pred_check
    _
  $region11: #{tpu_custom_call.1} parent=0 // pred_check_branch
    %14 = sbr.rel (0) target = $region13
  $region12: #{tpu_custom_call.1} parent=0 // pred_region
    _
  $region13: #{tpu_custom_call.1} parent=0 // pred_fallthru
    _
  // Predicated region
  $region14: #{tpu_custom_call.1} parent=0 // pred_check
    _
  $region15: #{tpu_custom_call.1} parent=0 // pred_check_branch
    %16 = sbr.rel (0) target = $region17
  $region16: #{tpu_custom_call.1} parent=0 // pred_region
    _
  $region17: #{tpu_custom_call.1} parent=0 // pred_fallthru
    _
  %v18 = vld [vmem:[%s3] sm:$0x1]
  %v19 = vld [vmem:[%s3 + $0x1] sm:$0x1]
  %v20 = vld [vmem:[%s3 + $0x2] sm:$0x1]
  %v21 = vld [vmem:[%s3 + $0x3] sm:$0x1]
  %v22 = vld [vmem:[%s0] sm:$0xff]
  %v23 = vld [vmem:[%s0 + $0x8] sm:$0xff]
  %v24 = vld [vmem:[%s0 + $0x10] sm:$0xff]
  %v25 = vld [vmem:[%s0 + $0x18] sm:$0xff]
  %v26 = vld [vmem:[%s0 + $0x20] sm:$0xff]
  %v27 = vld [vmem:[%s0 + $0x28] sm:$0xff]
  %v28 = vld [vmem:[%s0 + $0x30] sm:$0xff]
  %v29 = vld [vmem:[%s0 + $0x38] sm:$0xff]
  %v30 = vld [vmem:[%s0 + $0x40] sm:$0xff]
  %v31 = vld [vmem:[%s0 + $0x48] sm:$0xff]
  %v32 = vld [vmem:[%s0 + $0x50] sm:$0xff]
  %v33 = vld [vmem:[%s0 + $0x58] sm:$0xff]
  %v34 = vld [vmem:[%s0 + $0x60] sm:$0xff]
  %v35 = vld [vmem:[%s0 + $0x68] sm:$0xff]
  %v36 = vld [vmem:[%s0 + $0x70] sm:$0xff]
  %v37 = vld [vmem:[%s0 + $0x78] sm:$0xff]
  %v38 = vpack.c.bf16 %v23, %v22
  %v39 = vpack.c.bf16 %v25, %v24
  %v40 = vpack.c.bf16 %v27, %v26
  %v41 = vpack.c.bf16 %v29, %v28
  %v42 = vpack.c.bf16 %v31, %v30
  %v43 = vpack.c.bf16 %v33, %v32
  %v44 = vpack.c.bf16 %v35, %v34
  %v45 = vpack.c.bf16 %v37, %v36
  %v46 = vld [vmem:[%s1] sm:$0xf]
  %v47 = vld [vmem:[%s1 + $0x4] sm:$0xf]
  %v48 = vlaneseq
  %v49 = vshrl.u32 %v48, 7
  %v50 = vsub.s32 0, %v49
  %v51 = vrot.slane %v18, %v50
  %v54 = vunpack.c.l.b16 %v46
  %v55 = vunpack.c.l.b16 %v47
  %v56 = vpack.c.b16 %v55, %v54
  %vm58 = vcmask 130048
  %v60 = vsel %vm58, %v38, 0
  %v63 = vsel %vm58, %v39, 0
  %v66 = vsel %vm58, %v40, 0
  %v69 = vsel %vm58, %v41, 0
  %v72 = vsel %vm58, %v42, 0
  %v75 = vsel %vm58, %v43, 0
  %v78 = vsel %vm58, %v44, 0
  %v81 = vsel %vm58, %v45, 0
  %83 = vmatprep.subr.bf16.mxu0 0
  %84 = vmatpush1.bf16.msra.mxu0 0
  %85 = vmatprep.subr.bf16.mxu0 0
  %86 = vmatpush1.bf16.msra.mxu0 0
  %87 = vmatprep.subr.bf16.mxu0 0
  %88 = vmatpush1.bf16.msra.mxu0 0
  %89 = vmatprep.subr.bf16.mxu0 0
  %90 = vmatpush1.bf16.msra.mxu0 0
  %91 = vmatprep.subr.bf16.mxu0 0
  %92 = vmatpush1.bf16.msra.mxu0 0
  %93 = vmatprep.subr.bf16.mxu0 0
  %94 = vmatpush1.bf16.msra.mxu0 0
  %95 = vmatprep.subr.bf16.mxu0 0
  %96 = vmatpush1.bf16.msra.mxu0 0
  %97 = vmatprep.subr.bf16.mxu0 0
  %98 = vmatpush1.bf16.msra.mxu0 %v56
  %99 = vmatprep.subr.bf16.mxu0 0
  %100 = vmatpush2.bf16.msra.mxu0 0
  %101 = vmatprep.subr.bf16.mxu0 0
  %102 = vmatpush2.bf16.msra.mxu0 0
  %103 = vmatprep.subr.bf16.mxu0 0
  %104 = vmatpush2.bf16.msra.mxu0 0
  %105 = vmatprep.subr.bf16.mxu0 0
  %106 = vmatpush2.bf16.msra.mxu0 0
  %107 = vmatprep.subr.bf16.mxu0 0
  %108 = vmatpush2.bf16.msra.mxu0 0
  %109 = vmatprep.subr.bf16.mxu0 0
  %110 = vmatpush2.bf16.msra.mxu0 0
  %111 = vmatprep.subr.bf16.mxu0 0
  %112 = vmatpush2.bf16.msra.mxu0 0
  %113 = vmatprep.subr.bf16.mxu0 0
  %114 = vmatpush2.bf16.msra.mxu0 0
  %115 = vmatprep.mubr.bf16.mxu0 0
  %116 = vmatmul.mubr.bf16.gmra.mxu0 %v60
  %v117 = vpop.f32.mrf.mxu0
  %v118 = vadd.f32 %v51, %v117
  %v119 = vpop.f32.mrf.mxu0
  %v120 = vpop.f32.mrf.mxu0
  %v121 = vadd.f32 %v51, %v120
  %v122 = vpop.f32.mrf.mxu0
  %123 = vmatprep.mubr.bf16.mxu0 0
  %124 = vmatmul.mubr.bf16.gmra.mxu0 %v63
  %v125 = vpop.f32.mrf.mxu0
  %v126 = vadd.f32 %v51, %v125
  %v127 = vpop.f32.mrf.mxu0
  %v128 = vpop.f32.mrf.mxu0
  %v129 = vadd.f32 %v51, %v128
  %v130 = vpop.f32.mrf.mxu0
  %131 = vmatprep.mubr.bf16.mxu0 0
  %132 = vmatmul.mubr.bf16.gmra.mxu0 %v66
  %v133 = vpop.f32.mrf.mxu0
  %v134 = vadd.f32 %v51, %v133
  %v135 = vpop.f32.mrf.mxu0
  %v136 = vpop.f32.mrf.mxu0
  %v137 = vadd.f32 %v51, %v136
  %v138 = vpop.f32.mrf.mxu0
  %139 = vmatprep.mubr.bf16.mxu0 0
  %140 = vmatmul.mubr.bf16.gmra.mxu0 %v69
  %v141 = vpop.f32.mrf.mxu0
  %v142 = vadd.f32 %v51, %v141
  %v143 = vpop.f32.mrf.mxu0
  %v144 = vpop.f32.mrf.mxu0
  %v145 = vadd.f32 %v51, %v144
  %v146 = vpop.f32.mrf.mxu0
  %147 = vmatprep.mubr.bf16.mxu0 0
  %148 = vmatmul.mubr.bf16.gmra.mxu0 %v72
  %v149 = vpop.f32.mrf.mxu0
  %v150 = vadd.f32 %v51, %v149
  %v151 = vpop.f32.mrf.mxu0
  %v152 = vpop.f32.mrf.mxu0
  %v153 = vadd.f32 %v51, %v152
  %v154 = vpop.f32.mrf.mxu0
  %155 = vmatprep.mubr.bf16.mxu0 0
  %156 = vmatmul.mubr.bf16.gmra.mxu0 %v75
  %v157 = vpop.f32.mrf.mxu0
  %v158 = vadd.f32 %v51, %v157
  %v159 = vpop.f32.mrf.mxu0
  %v160 = vpop.f32.mrf.mxu0
  %v161 = vadd.f32 %v51, %v160
  %v162 = vpop.f32.mrf.mxu0
  %163 = vmatprep.mubr.bf16.mxu0 0
  %164 = vmatmul.mubr.bf16.gmra.mxu0 %v78
  %v165 = vpop.f32.mrf.mxu0
  %v166 = vadd.f32 %v51, %v165
  %v167 = vpop.f32.mrf.mxu0
  %v168 = vpop.f32.mrf.mxu0
  %v169 = vadd.f32 %v51, %v168
  %v170 = vpop.f32.mrf.mxu0
  %171 = vmatprep.mubr.bf16.mxu0 0
  %172 = vmatmul.mubr.bf16.gmra.mxu0 %v81
  %v173 = vpop.f32.mrf.mxu0
  %v174 = vadd.f32 %v51, %v173
  %v175 = vpop.f32.mrf.mxu0
  %v176 = vpop.f32.mrf.mxu0
  %v177 = vadd.f32 %v51, %v176
  %v178 = vpop.f32.mrf.mxu0
  %179 = vdwg.mxu0
  %vm180 = vcmask 261120
  %v181 = vsel %vm180, %v118, 0.0
  %182 = vadd.xlane.f32.xlu0 %v181
  %v183 = vpop.xlane.xlu0 %182
  %v184 = vsel %vm180, %v121, 0.0
  %185 = vadd.xlane.f32.xlu0 %v184
  %v186 = vpop.xlane.xlu0 %185
  %v187 = vsel %vm180, %v126, 0.0
  %188 = vadd.xlane.f32.xlu0 %v187
  %v189 = vpop.xlane.xlu0 %188
  %v190 = vsel %vm180, %v129, 0.0
  %191 = vadd.xlane.f32.xlu0 %v190
  %v192 = vpop.xlane.xlu0 %191
  %v193 = vsel %vm180, %v134, 0.0
  %194 = vadd.xlane.f32.xlu0 %v193
  %v195 = vpop.xlane.xlu0 %194
  %v196 = vsel %vm180, %v137, 0.0
  %197 = vadd.xlane.f32.xlu0 %v196
  %v198 = vpop.xlane.xlu0 %197
  %v199 = vsel %vm180, %v142, 0.0
  %200 = vadd.xlane.f32.xlu0 %v199
  %v201 = vpop.xlane.xlu0 %200
  %v202 = vsel %vm180, %v145, 0.0
  %203 = vadd.xlane.f32.xlu0 %v202
  %v204 = vpop.xlane.xlu0 %203
  %v205 = vsel %vm180, %v150, 0.0
  %206 = vadd.xlane.f32.xlu0 %v205
  %v207 = vpop.xlane.xlu0 %206
  %v208 = vsel %vm180, %v153, 0.0
  %209 = vadd.xlane.f32.xlu0 %v208
  %v210 = vpop.xlane.xlu0 %209
  %v211 = vsel %vm180, %v158, 0.0
  %212 = vadd.xlane.f32.xlu0 %v211
  %v213 = vpop.xlane.xlu0 %212
  %v214 = vsel %vm180, %v161, 0.0
  %215 = vadd.xlane.f32.xlu0 %v214
  %v216 = vpop.xlane.xlu0 %215
  %v217 = vsel %vm180, %v166, 0.0
  %218 = vadd.xlane.f32.xlu0 %v217
  %v219 = vpop.xlane.xlu0 %218
  %v220 = vsel %vm180, %v169, 0.0
  %221 = vadd.xlane.f32.xlu0 %v220
  %v222 = vpop.xlane.xlu0 %221
  %v223 = vsel %vm180, %v174, 0.0
  %224 = vadd.xlane.f32.xlu0 %v223
  %v225 = vpop.xlane.xlu0 %224
  %v226 = vsel %vm180, %v177, 0.0
  %227 = vadd.xlane.f32.xlu0 %v226
  %v228 = vpop.xlane.xlu0 %227
  %v229 = vrcp.pop 32.0
  %v230 = vmul.f32 %v183, %v229
  %v231 = vmul.f32 %v186, %v229
  %v232 = vmul.f32 %v189, %v229
  %v233 = vmul.f32 %v192, %v229
  %v234 = vmul.f32 %v195, %v229
  %v235 = vmul.f32 %v198, %v229
  %v236 = vmul.f32 %v201, %v229
  %v237 = vmul.f32 %v204, %v229
  %v238 = vmul.f32 %v207, %v229
  %v239 = vmul.f32 %v210, %v229
  %v240 = vmul.f32 %v213, %v229
  %v241 = vmul.f32 %v216, %v229
  %v242 = vmul.f32 %v219, %v229
  %v243 = vmul.f32 %v222, %v229
  %v244 = vmul.f32 %v225, %v229
  %v245 = vmul.f32 %v228, %v229
  %v246 = vmul.f32 %v118, %v118
  %v247 = vmul.f32 %v121, %v121
  %v248 = vmul.f32 %v126, %v126
  %v249 = vmul.f32 %v129, %v129
  %v250 = vmul.f32 %v134, %v134
  %v251 = vmul.f32 %v137, %v137
  %v252 = vmul.f32 %v142, %v142
  %v253 = vmul.f32 %v145, %v145
  %v254 = vmul.f32 %v150, %v150
  %v255 = vmul.f32 %v153, %v153
  %v256 = vmul.f32 %v158, %v158
  %v257 = vmul.f32 %v161, %v161
  %v258 = vmul.f32 %v166, %v166
  %v259 = vmul.f32 %v169, %v169
  %v260 = vmul.f32 %v174, %v174
  %v261 = vmul.f32 %v177, %v177
  %v262 = vsel %vm180, %v246, 0.0
  %263 = vadd.xlane.f32.xlu0 %v262
  %v264 = vpop.xlane.xlu0 %263
  %v265 = vsel %vm180, %v247, 0.0
  %266 = vadd.xlane.f32.xlu0 %v265
  %v267 = vpop.xlane.xlu0 %266
  %v268 = vsel %vm180, %v248, 0.0
  %269 = vadd.xlane.f32.xlu0 %v268
  %v270 = vpop.xlane.xlu0 %269
  %v271 = vsel %vm180, %v249, 0.0
  %272 = vadd.xlane.f32.xlu0 %v271
  %v273 = vpop.xlane.xlu0 %272
  %v274 = vsel %vm180, %v250, 0.0
  %275 = vadd.xlane.f32.xlu0 %v274
  %v276 = vpop.xlane.xlu0 %275
  %v277 = vsel %vm180, %v251, 0.0
  %278 = vadd.xlane.f32.xlu0 %v277
  %v279 = vpop.xlane.xlu0 %278
  %v280 = vsel %vm180, %v252, 0.0
  %281 = vadd.xlane.f32.xlu0 %v280
  %v282 = vpop.xlane.xlu0 %281
  %v283 = vsel %vm180, %v253, 0.0
  %284 = vadd.xlane.f32.xlu0 %v283
  %v285 = vpop.xlane.xlu0 %284
  %v286 = vsel %vm180, %v254, 0.0
  %287 = vadd.xlane.f32.xlu0 %v286
  %v288 = vpop.xlane.xlu0 %287
  %v289 = vsel %vm180, %v255, 0.0
  %290 = vadd.xlane.f32.xlu0 %v289
  %v291 = vpop.xlane.xlu0 %290
  %v292 = vsel %vm180, %v256, 0.0
  %293 = vadd.xlane.f32.xlu0 %v292
  %v294 = vpop.xlane.xlu0 %293
  %v295 = vsel %vm180, %v257, 0.0
  %296 = vadd.xlane.f32.xlu0 %v295
  %v297 = vpop.xlane.xlu0 %296
  %v298 = vsel %vm180, %v258, 0.0
  %299 = vadd.xlane.f32.xlu0 %v298
  %v300 = vpop.xlane.xlu0 %299
  %v301 = vsel %vm180, %v259, 0.0
  %302 = vadd.xlane.f32.xlu0 %v301
  %v303 = vpop.xlane.xlu0 %302
  %v304 = vsel %vm180, %v260, 0.0
  %305 = vadd.xlane.f32.xlu0 %v304
  %v306 = vpop.xlane.xlu0 %305
  %v307 = vsel %vm180, %v261, 0.0
  %308 = vadd.xlane.f32.xlu0 %v307
  %v309 = vpop.xlane.xlu0 %308
  %v310 = vmul.f32 %v264, %v229
  %v311 = vmul.f32 %v267, %v229
  %v312 = vmul.f32 %v270, %v229
  %v313 = vmul.f32 %v273, %v229
  %v314 = vmul.f32 %v276, %v229
  %v315 = vmul.f32 %v279, %v229
  %v316 = vmul.f32 %v282, %v229
  %v317 = vmul.f32 %v285, %v229
  %v318 = vmul.f32 %v288, %v229
  %v319 = vmul.f32 %v291, %v229
  %v320 = vmul.f32 %v294, %v229
  %v321 = vmul.f32 %v297, %v229
  %v322 = vmul.f32 %v300, %v229
  %v323 = vmul.f32 %v303, %v229
  %v324 = vmul.f32 %v306, %v229
  %v325 = vmul.f32 %v309, %v229
  %v326 = vmul.f32 %v230, %v230
  %v327 = vmul.f32 %v231, %v231
  %v328 = vmul.f32 %v232, %v232
  %v329 = vmul.f32 %v233, %v233
  %v330 = vmul.f32 %v234, %v234
  %v331 = vmul.f32 %v235, %v235
  %v332 = vmul.f32 %v236, %v236
  %v333 = vmul.f32 %v237, %v237
  %v334 = vmul.f32 %v238, %v238
  %v335 = vmul.f32 %v239, %v239
  %v336 = vmul.f32 %v240, %v240
  %v337 = vmul.f32 %v241, %v241
  %v338 = vmul.f32 %v242, %v242
  %v339 = vmul.f32 %v243, %v243
  %v340 = vmul.f32 %v244, %v244
  %v341 = vmul.f32 %v245, %v245
  %v342 = vsub.f32 %v310, %v326
  %v343 = vsub.f32 %v311, %v327
  %v344 = vsub.f32 %v312, %v328
  %v345 = vsub.f32 %v313, %v329
  %v346 = vsub.f32 %v314, %v330
  %v347 = vsub.f32 %v315, %v331
  %v348 = vsub.f32 %v316, %v332
  %v349 = vsub.f32 %v317, %v333
  %v350 = vsub.f32 %v318, %v334
  %v351 = vsub.f32 %v319, %v335
  %v352 = vsub.f32 %v320, %v336
  %v353 = vsub.f32 %v321, %v337
  %v354 = vsub.f32 %v322, %v338
  %v355 = vsub.f32 %v323, %v339
  %v356 = vsub.f32 %v324, %v340
  %v357 = vsub.f32 %v325, %v341
  %v358 = vmax.f32 %v342, 0.0
  %v359 = vmax.f32 %v343, 0.0
  %v360 = vmax.f32 %v344, 0.0
  %v361 = vmax.f32 %v345, 0.0
  %v362 = vmax.f32 %v346, 0.0
  %v363 = vmax.f32 %v347, 0.0
  %v364 = vmax.f32 %v348, 0.0
  %v365 = vmax.f32 %v349, 0.0
  %v366 = vmax.f32 %v350, 0.0
  %v367 = vmax.f32 %v351, 0.0
  %v368 = vmax.f32 %v352, 0.0
  %v369 = vmax.f32 %v353, 0.0
  %v370 = vmax.f32 %v354, 0.0
  %v371 = vmax.f32 %v355, 0.0
  %v372 = vmax.f32 %v356, 0.0
  %v373 = vmax.f32 %v357, 0.0
  %v374 = vsub.f32 %v118, %v230
  %v375 = vsub.f32 %v121, %v231
  %v376 = vsub.f32 %v126, %v232
  %v377 = vsub.f32 %v129, %v233
  %v378 = vsub.f32 %v134, %v234
  %v379 = vsub.f32 %v137, %v235
  %v380 = vsub.f32 %v142, %v236
  %v381 = vsub.f32 %v145, %v237
  %v382 = vsub.f32 %v150, %v238
  %v383 = vsub.f32 %v153, %v239
  %v384 = vsub.f32 %v158, %v240
  %v385 = vsub.f32 %v161, %v241
  %v386 = vsub.f32 %v166, %v242
  %v387 = vsub.f32 %v169, %v243
  %v388 = vsub.f32 %v174, %v244
  %v389 = vsub.f32 %v177, %v245
  %v390 = vadd.f32 %v358, 1e-05
  %v391 = vadd.f32 %v359, 1e-05
  %v392 = vadd.f32 %v360, 1e-05
  %v393 = vadd.f32 %v361, 1e-05
  %v394 = vadd.f32 %v362, 1e-05
  %v395 = vadd.f32 %v363, 1e-05
  %v396 = vadd.f32 %v364, 1e-05
  %v397 = vadd.f32 %v365, 1e-05
  %v398 = vadd.f32 %v366, 1e-05
  %v399 = vadd.f32 %v367, 1e-05
  %v400 = vadd.f32 %v368, 1e-05
  %v401 = vadd.f32 %v369, 1e-05
  %v402 = vadd.f32 %v370, 1e-05
  %v403 = vadd.f32 %v371, 1e-05
  %v404 = vadd.f32 %v372, 1e-05
  %v405 = vadd.f32 %v373, 1e-05
  %v406 = vrsqrt.pop %v390
  %v407 = vrsqrt.pop %v391
  %v408 = vrsqrt.pop %v392
  %v409 = vrsqrt.pop %v393
  %v410 = vrsqrt.pop %v394
  %v411 = vrsqrt.pop %v395
  %v412 = vrsqrt.pop %v396
  %v413 = vrsqrt.pop %v397
  %v414 = vrsqrt.pop %v398
  %v415 = vrsqrt.pop %v399
  %v416 = vrsqrt.pop %v400
  %v417 = vrsqrt.pop %v401
  %v418 = vrsqrt.pop %v402
  %v419 = vrsqrt.pop %v403
  %v420 = vrsqrt.pop %v404
  %v421 = vrsqrt.pop %v405
  %v422 = vmul.f32 %v374, %v406
  %v423 = vmul.f32 %v375, %v407
  %v424 = vmul.f32 %v376, %v408
  %v425 = vmul.f32 %v377, %v409
  %v426 = vmul.f32 %v378, %v410
  %v427 = vmul.f32 %v379, %v411
  %v428 = vmul.f32 %v380, %v412
  %v429 = vmul.f32 %v381, %v413
  %v430 = vmul.f32 %v382, %v414
  %v431 = vmul.f32 %v383, %v415
  %v432 = vmul.f32 %v384, %v416
  %v433 = vmul.f32 %v385, %v417
  %v434 = vmul.f32 %v386, %v418
  %v435 = vmul.f32 %v387, %v419
  %v436 = vmul.f32 %v388, %v420
  %v437 = vmul.f32 %v389, %v421
  %v438 = vlaneseq
  %v439 = vshrl.u32 %v438, 7
  %v440 = vsub.s32 0, %v439
  %v441 = vrot.slane %v20, %v440
  %v442 = vmul.f32 %v422, %v441
  %v443 = vmul.f32 %v423, %v441
  %v444 = vmul.f32 %v424, %v441
  %v445 = vmul.f32 %v425, %v441
  %v446 = vmul.f32 %v426, %v441
  %v447 = vmul.f32 %v427, %v441
  %v448 = vmul.f32 %v428, %v441
  %v449 = vmul.f32 %v429, %v441
  %v450 = vmul.f32 %v430, %v441
  %v451 = vmul.f32 %v431, %v441
  %v452 = vmul.f32 %v432, %v441
  %v453 = vmul.f32 %v433, %v441
  %v454 = vmul.f32 %v434, %v441
  %v455 = vmul.f32 %v435, %v441
  %v456 = vmul.f32 %v436, %v441
  %v457 = vmul.f32 %v437, %v441
  %v458 = vlaneseq
  %v459 = vshrl.u32 %v458, 7
  %v460 = vsub.s32 0, %v459
  %v461 = vrot.slane %v21, %v460
  %v462 = vadd.f32 %v442, %v461
  %v463 = vadd.f32 %v443, %v461
  %v464 = vadd.f32 %v444, %v461
  %v465 = vadd.f32 %v445, %v461
  %v466 = vadd.f32 %v446, %v461
  %v467 = vadd.f32 %v447, %v461
  %v468 = vadd.f32 %v448, %v461
  %v469 = vadd.f32 %v449, %v461
  %v470 = vadd.f32 %v450, %v461
  %v471 = vadd.f32 %v451, %v461
  %v472 = vadd.f32 %v452, %v461
  %v473 = vadd.f32 %v453, %v461
  %v474 = vadd.f32 %v454, %v461
  %v475 = vadd.f32 %v455, %v461
  %v476 = vadd.f32 %v456, %v461
  %v477 = vadd.f32 %v457, %v461
  %v478 = vmax.f32 %v462, 0.0
  %v479 = vmax.f32 %v463, 0.0
  %v480 = vmax.f32 %v464, 0.0
  %v481 = vmax.f32 %v465, 0.0
  %v482 = vmax.f32 %v466, 0.0
  %v483 = vmax.f32 %v467, 0.0
  %v484 = vmax.f32 %v468, 0.0
  %v485 = vmax.f32 %v469, 0.0
  %v486 = vmax.f32 %v470, 0.0
  %v487 = vmax.f32 %v471, 0.0
  %v488 = vmax.f32 %v472, 0.0
  %v489 = vmax.f32 %v473, 0.0
  %v490 = vmax.f32 %v474, 0.0
  %v491 = vmax.f32 %v475, 0.0
  %v492 = vmax.f32 %v476, 0.0
  %v493 = vmax.f32 %v477, 0.0
  %v494 = vpack.c.bf16 %v479, %v478
  %v495 = vpack.c.bf16 %v481, %v480
  %v496 = vpack.c.bf16 %v483, %v482
  %v497 = vpack.c.bf16 %v485, %v484
  %v498 = vpack.c.bf16 %v487, %v486
  %v499 = vpack.c.bf16 %v489, %v488
  %v500 = vpack.c.bf16 %v491, %v490
  %v501 = vpack.c.bf16 %v493, %v492
  %v502 = vld [vmem:[%s2] sm:$0xf]
  %v503 = vld [vmem:[%s2 + $0x4] sm:$0xf]
  %v504 = vld [vmem:[%s2 + $0x8] sm:$0xf]
  %v505 = vld [vmem:[%s2 + $0xc] sm:$0xf]
  %v506 = vlaneseq
  %v507 = vshrl.u32 %v506, 7
  %v508 = vsub.s32 0, %v507
  %v509 = vrot.slane %v19, %v508
  %v514 = vunpack.c.l.b16 %v502
  %v515 = vunpack.c.l.b16 %v503
  %v516 = vunpack.c.l.b16 %v504
  %v517 = vunpack.c.l.b16 %v505
  %v518 = vpack.c.b16 %v515, %v514
  %v519 = vpack.c.b16 %v517, %v516
  %v523 = vsel %vm180, %v494, 0
  %v526 = vsel %vm180, %v495, 0
  %v529 = vsel %vm180, %v496, 0
  %v532 = vsel %vm180, %v497, 0
  %v535 = vsel %vm180, %v498, 0
  %v538 = vsel %vm180, %v499, 0
  %v541 = vsel %vm180, %v500, 0
  %v544 = vsel %vm180, %v501, 0
  %546 = vmatprep.subr.bf16.mxu0 0
  %547 = vmatpush1.bf16.msra.mxu0 0
  %548 = vmatprep.subr.bf16.mxu0 0
  %549 = vmatpush1.bf16.msra.mxu0 0
  %550 = vmatprep.subr.bf16.mxu0 0
  %551 = vmatpush1.bf16.msra.mxu0 0
  %552 = vmatprep.subr.bf16.mxu0 0
  %553 = vmatpush1.bf16.msra.mxu0 0
  %554 = vmatprep.subr.bf16.mxu0 0
  %555 = vmatpush1.bf16.msra.mxu0 0
  %556 = vmatprep.subr.bf16.mxu0 0
  %557 = vmatpush1.bf16.msra.mxu0 0
  %558 = vmatprep.subr.bf16.mxu0 0
  %559 = vmatpush1.bf16.msra.mxu0 %v519
  %560 = vmatprep.subr.bf16.mxu0 0
  %561 = vmatpush1.bf16.msra.mxu0 %v518
  %562 = vmatprep.subr.bf16.mxu0 0
  %563 = vmatpush2.bf16.msra.mxu0 0
  %564 = vmatprep.subr.bf16.mxu0 0
  %565 = vmatpush2.bf16.msra.mxu0 0
  %566 = vmatprep.subr.bf16.mxu0 0
  %567 = vmatpush2.bf16.msra.mxu0 0
  %568 = vmatprep.subr.bf16.mxu0 0
  %569 = vmatpush2.bf16.msra.mxu0 0
  %570 = vmatprep.subr.bf16.mxu0 0
  %571 = vmatpush2.bf16.msra.mxu0 0
  %572 = vmatprep.subr.bf16.mxu0 0
  %573 = vmatpush2.bf16.msra.mxu0 0
  %574 = vmatprep.subr.bf16.mxu0 0
  %575 = vmatpush2.bf16.msra.mxu0 0
  %576 = vmatprep.subr.bf16.mxu0 0
  %577 = vmatpush2.bf16.msra.mxu0 0
  %578 = vmatprep.mubr.bf16.mxu0 0
  %579 = vmatmul.mubr.bf16.gmra.mxu0 %v523
  %v580 = vpop.f32.mrf.mxu0
  %v581 = vadd.f32 %v509, %v580
  %v582 = vpop.f32.mrf.mxu0
  %v583 = vpop.f32.mrf.mxu0
  %v584 = vadd.f32 %v509, %v583
  %v585 = vpop.f32.mrf.mxu0
  %586 = vmatprep.mubr.bf16.mxu0 0
  %587 = vmatmul.mubr.bf16.gmra.mxu0 %v526
  %v588 = vpop.f32.mrf.mxu0
  %v589 = vadd.f32 %v509, %v588
  %v590 = vpop.f32.mrf.mxu0
  %v591 = vpop.f32.mrf.mxu0
  %v592 = vadd.f32 %v509, %v591
  %v593 = vpop.f32.mrf.mxu0
  %594 = vmatprep.mubr.bf16.mxu0 0
  %595 = vmatmul.mubr.bf16.gmra.mxu0 %v529
  %v596 = vpop.f32.mrf.mxu0
  %v597 = vadd.f32 %v509, %v596
  %v598 = vpop.f32.mrf.mxu0
  %v599 = vpop.f32.mrf.mxu0
  %v600 = vadd.f32 %v509, %v599
  %v601 = vpop.f32.mrf.mxu0
  %602 = vmatprep.mubr.bf16.mxu0 0
  %603 = vmatmul.mubr.bf16.gmra.mxu0 %v532
  %v604 = vpop.f32.mrf.mxu0
  %v605 = vadd.f32 %v509, %v604
  %v606 = vpop.f32.mrf.mxu0
  %v607 = vpop.f32.mrf.mxu0
  %v608 = vadd.f32 %v509, %v607
  %v609 = vpop.f32.mrf.mxu0
  %610 = vmatprep.mubr.bf16.mxu0 0
  %611 = vmatmul.mubr.bf16.gmra.mxu0 %v535
  %v612 = vpop.f32.mrf.mxu0
  %v613 = vadd.f32 %v509, %v612
  %v614 = vpop.f32.mrf.mxu0
  %v615 = vpop.f32.mrf.mxu0
  %v616 = vadd.f32 %v509, %v615
  %v617 = vpop.f32.mrf.mxu0
  %618 = vmatprep.mubr.bf16.mxu0 0
  %619 = vmatmul.mubr.bf16.gmra.mxu0 %v538
  %v620 = vpop.f32.mrf.mxu0
  %v621 = vadd.f32 %v509, %v620
  %v622 = vpop.f32.mrf.mxu0
  %v623 = vpop.f32.mrf.mxu0
  %v624 = vadd.f32 %v509, %v623
  %v625 = vpop.f32.mrf.mxu0
  %626 = vmatprep.mubr.bf16.mxu0 0
  %627 = vmatmul.mubr.bf16.gmra.mxu0 %v541
  %v628 = vpop.f32.mrf.mxu0
  %v629 = vadd.f32 %v509, %v628
  %v630 = vpop.f32.mrf.mxu0
  %v631 = vpop.f32.mrf.mxu0
  %v632 = vadd.f32 %v509, %v631
  %v633 = vpop.f32.mrf.mxu0
  %634 = vmatprep.mubr.bf16.mxu0 0
  %635 = vmatmul.mubr.bf16.gmra.mxu0 %v544
  %v636 = vpop.f32.mrf.mxu0
  %v637 = vadd.f32 %v509, %v636
  %v638 = vpop.f32.mrf.mxu0
  %v639 = vpop.f32.mrf.mxu0
  %v640 = vadd.f32 %v509, %v639
  %v641 = vpop.f32.mrf.mxu0
  %642 = vdwg.mxu0
  %v643 = vsel %vm180, %v581, 0.0
  %644 = vadd.xlane.f32.xlu0 %v643
  %v645 = vpop.xlane.xlu0 %644
  %v646 = vsel %vm180, %v584, 0.0
  %647 = vadd.xlane.f32.xlu0 %v646
  %v648 = vpop.xlane.xlu0 %647
  %v649 = vsel %vm180, %v589, 0.0
  %650 = vadd.xlane.f32.xlu0 %v649
  %v651 = vpop.xlane.xlu0 %650
  %v652 = vsel %vm180, %v592, 0.0
  %653 = vadd.xlane.f32.xlu0 %v652
  %v654 = vpop.xlane.xlu0 %653
  %v655 = vsel %vm180, %v597, 0.0
  %656 = vadd.xlane.f32.xlu0 %v655
  %v657 = vpop.xlane.xlu0 %656
  %v658 = vsel %vm180, %v600, 0.0
  %659 = vadd.xlane.f32.xlu0 %v658
  %v660 = vpop.xlane.xlu0 %659
  %v661 = vsel %vm180, %v605, 0.0
  %662 = vadd.xlane.f32.xlu0 %v661
  %v663 = vpop.xlane.xlu0 %662
  %v664 = vsel %vm180, %v608, 0.0
  %665 = vadd.xlane.f32.xlu0 %v664
  %v666 = vpop.xlane.xlu0 %665
  %v667 = vsel %vm180, %v613, 0.0
  %668 = vadd.xlane.f32.xlu0 %v667
  %v669 = vpop.xlane.xlu0 %668
  %v670 = vsel %vm180, %v616, 0.0
  %671 = vadd.xlane.f32.xlu0 %v670
  %v672 = vpop.xlane.xlu0 %671
  %v673 = vsel %vm180, %v621, 0.0
  %674 = vadd.xlane.f32.xlu0 %v673
  %v675 = vpop.xlane.xlu0 %674
  %v676 = vsel %vm180, %v624, 0.0
  %677 = vadd.xlane.f32.xlu0 %v676
  %v678 = vpop.xlane.xlu0 %677
  %v679 = vsel %vm180, %v629, 0.0
  %680 = vadd.xlane.f32.xlu0 %v679
  %v681 = vpop.xlane.xlu0 %680
  %v682 = vsel %vm180, %v632, 0.0
  %683 = vadd.xlane.f32.xlu0 %v682
  %v684 = vpop.xlane.xlu0 %683
  %v685 = vsel %vm180, %v637, 0.0
  %686 = vadd.xlane.f32.xlu0 %v685
  %v687 = vpop.xlane.xlu0 %686
  %v688 = vsel %vm180, %v640, 0.0
  %689 = vadd.xlane.f32.xlu0 %v688
  %v690 = vpop.xlane.xlu0 %689
  %v691 = vmul.f32 %v645, %v229
  %v692 = vmul.f32 %v648, %v229
  %v693 = vmul.f32 %v651, %v229
  %v694 = vmul.f32 %v654, %v229
  %v695 = vmul.f32 %v657, %v229
  %v696 = vmul.f32 %v660, %v229
  %v697 = vmul.f32 %v663, %v229
  %v698 = vmul.f32 %v666, %v229
  %v699 = vmul.f32 %v669, %v229
  %v700 = vmul.f32 %v672, %v229
  %v701 = vmul.f32 %v675, %v229
  %v702 = vmul.f32 %v678, %v229
  %v703 = vmul.f32 %v681, %v229
  %v704 = vmul.f32 %v684, %v229
  %v705 = vmul.f32 %v687, %v229
  %v706 = vmul.f32 %v690, %v229
  %v707 = vmul.f32 %v581, %v581
  %v708 = vmul.f32 %v584, %v584
  %v709 = vmul.f32 %v589, %v589
  %v710 = vmul.f32 %v592, %v592
  %v711 = vmul.f32 %v597, %v597
  %v712 = vmul.f32 %v600, %v600
  %v713 = vmul.f32 %v605, %v605
  %v714 = vmul.f32 %v608, %v608
  %v715 = vmul.f32 %v613, %v613
  %v716 = vmul.f32 %v616, %v616
  %v717 = vmul.f32 %v621, %v621
  %v718 = vmul.f32 %v624, %v624
  %v719 = vmul.f32 %v629, %v629
  %v720 = vmul.f32 %v632, %v632
  %v721 = vmul.f32 %v637, %v637
  %v722 = vmul.f32 %v640, %v640
  %v723 = vsel %vm180, %v707, 0.0
  %724 = vadd.xlane.f32.xlu0 %v723
  %v725 = vpop.xlane.xlu0 %724
  %v726 = vsel %vm180, %v708, 0.0
  %727 = vadd.xlane.f32.xlu0 %v726
  %v728 = vpop.xlane.xlu0 %727
  %v729 = vsel %vm180, %v709, 0.0
  %730 = vadd.xlane.f32.xlu0 %v729
  %v731 = vpop.xlane.xlu0 %730
  %v732 = vsel %vm180, %v710, 0.0
  %733 = vadd.xlane.f32.xlu0 %v732
  %v734 = vpop.xlane.xlu0 %733
  %v735 = vsel %vm180, %v711, 0.0
  %736 = vadd.xlane.f32.xlu0 %v735
  %v737 = vpop.xlane.xlu0 %736
  %v738 = vsel %vm180, %v712, 0.0
  %739 = vadd.xlane.f32.xlu0 %v738
  %v740 = vpop.xlane.xlu0 %739
  %v741 = vsel %vm180, %v713, 0.0
  %742 = vadd.xlane.f32.xlu0 %v741
  %v743 = vpop.xlane.xlu0 %742
  %v744 = vsel %vm180, %v714, 0.0
  %745 = vadd.xlane.f32.xlu0 %v744
  %v746 = vpop.xlane.xlu0 %745
  %v747 = vsel %vm180, %v715, 0.0
  %748 = vadd.xlane.f32.xlu0 %v747
  %v749 = vpop.xlane.xlu0 %748
  %v750 = vsel %vm180, %v716, 0.0
  %751 = vadd.xlane.f32.xlu0 %v750
  %v752 = vpop.xlane.xlu0 %751
  %v753 = vsel %vm180, %v717, 0.0
  %754 = vadd.xlane.f32.xlu0 %v753
  %v755 = vpop.xlane.xlu0 %754
  %v756 = vsel %vm180, %v718, 0.0
  %757 = vadd.xlane.f32.xlu0 %v756
  %v758 = vpop.xlane.xlu0 %757
  %v759 = vsel %vm180, %v719, 0.0
  %760 = vadd.xlane.f32.xlu0 %v759
  %v761 = vpop.xlane.xlu0 %760
  %v762 = vsel %vm180, %v720, 0.0
  %763 = vadd.xlane.f32.xlu0 %v762
  %v764 = vpop.xlane.xlu0 %763
  %v765 = vsel %vm180, %v721, 0.0
  %766 = vadd.xlane.f32.xlu0 %v765
  %v767 = vpop.xlane.xlu0 %766
  %v768 = vsel %vm180, %v722, 0.0
  %769 = vadd.xlane.f32.xlu0 %v768
  %v770 = vpop.xlane.xlu0 %769
  %v771 = vmul.f32 %v725, %v229
  %v772 = vmul.f32 %v728, %v229
  %v773 = vmul.f32 %v731, %v229
  %v774 = vmul.f32 %v734, %v229
  %v775 = vmul.f32 %v737, %v229
  %v776 = vmul.f32 %v740, %v229
  %v777 = vmul.f32 %v743, %v229
  %v778 = vmul.f32 %v746, %v229
  %v779 = vmul.f32 %v749, %v229
  %v780 = vmul.f32 %v752, %v229
  %v781 = vmul.f32 %v755, %v229
  %v782 = vmul.f32 %v758, %v229
  %v783 = vmul.f32 %v761, %v229
  %v784 = vmul.f32 %v764, %v229
  %v785 = vmul.f32 %v767, %v229
  %v786 = vmul.f32 %v770, %v229
  %v787 = vmul.f32 %v691, %v691
  %v788 = vmul.f32 %v692, %v692
  %v789 = vmul.f32 %v693, %v693
  %v790 = vmul.f32 %v694, %v694
  %v791 = vmul.f32 %v695, %v695
  %v792 = vmul.f32 %v696, %v696
  %v793 = vmul.f32 %v697, %v697
  %v794 = vmul.f32 %v698, %v698
  %v795 = vmul.f32 %v699, %v699
  %v796 = vmul.f32 %v700, %v700
  %v797 = vmul.f32 %v701, %v701
  %v798 = vmul.f32 %v702, %v702
  %v799 = vmul.f32 %v703, %v703
  %v800 = vmul.f32 %v704, %v704
  %v801 = vmul.f32 %v705, %v705
  %v802 = vmul.f32 %v706, %v706
  %v803 = vsub.f32 %v771, %v787
  %v804 = vsub.f32 %v772, %v788
  %v805 = vsub.f32 %v773, %v789
  %v806 = vsub.f32 %v774, %v790
  %v807 = vsub.f32 %v775, %v791
  %v808 = vsub.f32 %v776, %v792
  %v809 = vsub.f32 %v777, %v793
  %v810 = vsub.f32 %v778, %v794
  %v811 = vsub.f32 %v779, %v795
  %v812 = vsub.f32 %v780, %v796
  %v813 = vsub.f32 %v781, %v797
  %v814 = vsub.f32 %v782, %v798
  %v815 = vsub.f32 %v783, %v799
  %v816 = vsub.f32 %v784, %v800
  %v817 = vsub.f32 %v785, %v801
  %v818 = vsub.f32 %v786, %v802
  %v819 = vmax.f32 %v803, 0.0
  %v820 = vmax.f32 %v804, 0.0
  %v821 = vmax.f32 %v805, 0.0
  %v822 = vmax.f32 %v806, 0.0
  %v823 = vmax.f32 %v807, 0.0
  %v824 = vmax.f32 %v808, 0.0
  %v825 = vmax.f32 %v809, 0.0
  %v826 = vmax.f32 %v810, 0.0
  %v827 = vmax.f32 %v811, 0.0
  %v828 = vmax.f32 %v812, 0.0
  %v829 = vmax.f32 %v813, 0.0
  %v830 = vmax.f32 %v814, 0.0
  %v831 = vmax.f32 %v815, 0.0
  %v832 = vmax.f32 %v816, 0.0
  %v833 = vmax.f32 %v817, 0.0
  %v834 = vmax.f32 %v818, 0.0
  %v835 = vsub.f32 %v581, %v691
  %v836 = vsub.f32 %v584, %v692
  %v837 = vsub.f32 %v589, %v693
  %v838 = vsub.f32 %v592, %v694
  %v839 = vsub.f32 %v597, %v695
  %v840 = vsub.f32 %v600, %v696
  %v841 = vsub.f32 %v605, %v697
  %v842 = vsub.f32 %v608, %v698
  %v843 = vsub.f32 %v613, %v699
  %v844 = vsub.f32 %v616, %v700
  %v845 = vsub.f32 %v621, %v701
  %v846 = vsub.f32 %v624, %v702
  %v847 = vsub.f32 %v629, %v703
  %v848 = vsub.f32 %v632, %v704
  %v849 = vsub.f32 %v637, %v705
  %v850 = vsub.f32 %v640, %v706
  %v851 = vadd.f32 %v819, 1e-05
  %v852 = vadd.f32 %v820, 1e-05
  %v853 = vadd.f32 %v821, 1e-05
  %v854 = vadd.f32 %v822, 1e-05
  %v855 = vadd.f32 %v823, 1e-05
  %v856 = vadd.f32 %v824, 1e-05
  %v857 = vadd.f32 %v825, 1e-05
  %v858 = vadd.f32 %v826, 1e-05
  %v859 = vadd.f32 %v827, 1e-05
  %v860 = vadd.f32 %v828, 1e-05
  %v861 = vadd.f32 %v829, 1e-05
  %v862 = vadd.f32 %v830, 1e-05
  %v863 = vadd.f32 %v831, 1e-05
  %v864 = vadd.f32 %v832, 1e-05
  %v865 = vadd.f32 %v833, 1e-05
  %v866 = vadd.f32 %v834, 1e-05
  %v867 = vrsqrt.pop %v851
  %v868 = vrsqrt.pop %v852
  %v869 = vrsqrt.pop %v853
  %v870 = vrsqrt.pop %v854
  %v871 = vrsqrt.pop %v855
  %v872 = vrsqrt.pop %v856
  %v873 = vrsqrt.pop %v857
  %v874 = vrsqrt.pop %v858
  %v875 = vrsqrt.pop %v859
  %v876 = vrsqrt.pop %v860
  %v877 = vrsqrt.pop %v861
  %v878 = vrsqrt.pop %v862
  %v879 = vrsqrt.pop %v863
  %v880 = vrsqrt.pop %v864
  %v881 = vrsqrt.pop %v865
  %v882 = vrsqrt.pop %v866
  %v883 = vmul.f32 %v835, %v867
  %v884 = vmul.f32 %v836, %v868
  %v885 = vmul.f32 %v837, %v869
  %v886 = vmul.f32 %v838, %v870
  %v887 = vmul.f32 %v839, %v871
  %v888 = vmul.f32 %v840, %v872
  %v889 = vmul.f32 %v841, %v873
  %v890 = vmul.f32 %v842, %v874
  %v891 = vmul.f32 %v843, %v875
  %v892 = vmul.f32 %v844, %v876
  %v893 = vmul.f32 %v845, %v877
  %v894 = vmul.f32 %v846, %v878
  %v895 = vmul.f32 %v847, %v879
  %v896 = vmul.f32 %v848, %v880
  %v897 = vmul.f32 %v849, %v881
  %v898 = vmul.f32 %v850, %v882
  %v899 = vmul.f32 %v883, %v441
  %v900 = vmul.f32 %v884, %v441
  %v901 = vmul.f32 %v885, %v441
  %v902 = vmul.f32 %v886, %v441
  %v903 = vmul.f32 %v887, %v441
  %v904 = vmul.f32 %v888, %v441
  %v905 = vmul.f32 %v889, %v441
  %v906 = vmul.f32 %v890, %v441
  %v907 = vmul.f32 %v891, %v441
  %v908 = vmul.f32 %v892, %v441
  %v909 = vmul.f32 %v893, %v441
  %v910 = vmul.f32 %v894, %v441
  %v911 = vmul.f32 %v895, %v441
  %v912 = vmul.f32 %v896, %v441
  %v913 = vmul.f32 %v897, %v441
  %v914 = vmul.f32 %v898, %v441
  %v915 = vadd.f32 %v899, %v461
  %v916 = vadd.f32 %v900, %v461
  %v917 = vadd.f32 %v901, %v461
  %v918 = vadd.f32 %v902, %v461
  %v919 = vadd.f32 %v903, %v461
  %v920 = vadd.f32 %v904, %v461
  %v921 = vadd.f32 %v905, %v461
  %v922 = vadd.f32 %v906, %v461
  %v923 = vadd.f32 %v907, %v461
  %v924 = vadd.f32 %v908, %v461
  %v925 = vadd.f32 %v909, %v461
  %v926 = vadd.f32 %v910, %v461
  %v927 = vadd.f32 %v911, %v461
  %v928 = vadd.f32 %v912, %v461
  %v929 = vadd.f32 %v913, %v461
  %v930 = vadd.f32 %v914, %v461
  %v931 = vmax.f32 %v915, 0.0
  %v932 = vmax.f32 %v916, 0.0
  %v933 = vmax.f32 %v917, 0.0
  %v934 = vmax.f32 %v918, 0.0
  %v935 = vmax.f32 %v919, 0.0
  %v936 = vmax.f32 %v920, 0.0
  %v937 = vmax.f32 %v921, 0.0
  %v938 = vmax.f32 %v922, 0.0
  %v939 = vmax.f32 %v923, 0.0
  %v940 = vmax.f32 %v924, 0.0
  %v941 = vmax.f32 %v925, 0.0
  %v942 = vmax.f32 %v926, 0.0
  %v943 = vmax.f32 %v927, 0.0
  %v944 = vmax.f32 %v928, 0.0
  %v945 = vmax.f32 %v929, 0.0
  %v946 = vmax.f32 %v930, 0.0
  %947 = vst.msk [vmem:[%s4] sm:$0xff] %vm180, %v931
  %948 = vst.msk [vmem:[%s4 + $0x8] sm:$0xff] %vm180, %v932
  %949 = vst.msk [vmem:[%s4 + $0x10] sm:$0xff] %vm180, %v933
  %950 = vst.msk [vmem:[%s4 + $0x18] sm:$0xff] %vm180, %v934
  %951 = vst.msk [vmem:[%s4 + $0x20] sm:$0xff] %vm180, %v935
  %952 = vst.msk [vmem:[%s4 + $0x28] sm:$0xff] %vm180, %v936
  %953 = vst.msk [vmem:[%s4 + $0x30] sm:$0xff] %vm180, %v937
  %954 = vst.msk [vmem:[%s4 + $0x38] sm:$0xff] %vm180, %v938
  %955 = vst.msk [vmem:[%s4 + $0x40] sm:$0xff] %vm180, %v939
  %956 = vst.msk [vmem:[%s4 + $0x48] sm:$0xff] %vm180, %v940
  %957 = vst.msk [vmem:[%s4 + $0x50] sm:$0xff] %vm180, %v941
  %958 = vst.msk [vmem:[%s4 + $0x58] sm:$0xff] %vm180, %v942
  %959 = vst.msk [vmem:[%s4 + $0x60] sm:$0xff] %vm180, %v943
  %960 = vst.msk [vmem:[%s4 + $0x68] sm:$0xff] %vm180, %v944
  %961 = vst.msk [vmem:[%s4 + $0x70] sm:$0xff] %vm180, %v945
  %962 = vst.msk [vmem:[%s4 + $0x78] sm:$0xff] %vm180, %v946
  // Predicated region
  $region18: #{tpu_custom_call.1} parent=0 // pred_check
    _
  $region19: #{tpu_custom_call.1} parent=0 // pred_check_branch
    %964 = sbr.rel (0) target = $region21
  $region20: #{tpu_custom_call.1} parent=0 // pred_region
    _
  $region21: #{tpu_custom_call.1} parent=0 // pred_fallthru
    _
  // Predicated region
  $region22: #{tpu_custom_call.1} parent=0 // pred_check
    _
  $region23: #{tpu_custom_call.1} parent=0 // pred_check_branch
    %966 = sbr.rel (0) target = $region25
  $region24: #{tpu_custom_call.1} parent=0 // pred_region
    _
  $region25: #{tpu_custom_call.1} parent=0 // pred_fallthru
    _

</llo_original>
